<compile_context>
chip_gen: v5e
topology: v5e:2x2
jax: 0.10.0
libtpu: 0.0.40
codegen_flags: <defaults>
</compile_context>

<pallas_src>
import functools
import math

import jax
import jax.numpy as jnp
import numpy as np
from jax.experimental import pallas as pl
from jax.experimental.pallas import tpu as pltpu

_KRON_BYTES_LIMIT = 8 * 1024 * 1024


def _round_up(x: int, m: int) -> int:
    return (x + m - 1) // m * m


def _cdiv(a: int, b: int) -> int:
    return (a + b - 1) // b


@functools.lru_cache(maxsize=1)
def _tpu_info():
    """(vmem_capacity_bytes, is_v5, multi_core) - trace-time hardware query."""
    kind = ""
    try:
        kind = jax.devices()[0].device_kind.lower()
    except Exception:
        pass
    vmem_cap = None
    try:
        vmem_cap = int(pltpu.get_tpu_info().vmem_capacity_bytes)
    except Exception:
        vmem_cap = None
    if vmem_cap is None or vmem_cap <= 0:
        vmem_cap = (64 if "v7" in kind else 128) * 1024 * 1024
    is_v5 = "v5" in kind
    multi_core = "v7" in kind          # 2 TensorCores per chip
    return vmem_cap, is_v5, multi_core


def _vmem_limit_bytes() -> int:
    cap, _, _ = _tpu_info()
    # ~55% of physical per-core VMEM: headroom on v7x (64 MiB), big tiles on
    # v5e/v6e (128 MiB); always above the 16/32 MiB default scoped limit.
    return max(32 * 1024 * 1024, min(int(cap * 0.55), 96 * 1024 * 1024))


# ---------------------------------------------------------------------------
# Bilinear interpolation weights (PyTorch align_corners=False source-index math),
# built with numpy at trace time -- the gather becomes a matmul.
# ---------------------------------------------------------------------------
def _bilinear_weight_matrix(out_size: int, in_size: int) -> np.ndarray:
    """Rows: output index, cols: input index. Each row has <= 2 non-zeros."""
    scale = in_size / out_size
    o = np.arange(out_size, dtype=np.float64)
    src = (o + 0.5) * scale - 0.5
    src = np.maximum(src, 0.0)                      # PyTorch clamps negative src to 0
    i0 = np.minimum(np.floor(src).astype(np.int64), in_size - 1)
    i1 = np.minimum(i0 + 1, in_size - 1)
    w1 = (src - i0).astype(np.float32)
    w0 = (1.0 - w1).astype(np.float32)
    rows = np.arange(out_size)
    W = np.zeros((out_size, in_size), np.float32)
    W[rows, i0] += w0
    W[rows, i1] += w1
    return W


# ---------------------------------------------------------------------------
# Bilinear resize kernels
# ---------------------------------------------------------------------------
def _bilinear_matmul_kernel(x_ref, kt_ref, o_ref):
    # x_ref: (MB, h*w) chunk of images; kt_ref: (h*w, H*W) kron weight matrix.
    # Dtypes follow the input (bf16 -> bf16 MXU path); f32 accumulation.
    o_ref[...] = jnp.dot(x_ref[...], kt_ref[...],
                         preferred_element_type=jnp.float32).astype(o_ref.dtype)


def _bilinear_separable_kernel(x_ref, wy_ref, wxt_ref, o_ref, *, g):
    # Fallback (large maps): out = Wy @ img @ Wx^T, Wx passed pre-transposed.
    # A static unrolled loop over `g` images per grid step amortizes the
    # ~0.35us per-step overhead and produces sublane/lane-dense transfers.
    wy = wy_ref[...]
    wxt = wxt_ref[...]
    for i in range(g):                                                      # static unroll
        img = x_ref[i].astype(jnp.float32)                                  # (h, w)
        tmp = jnp.dot(wy, img, preferred_element_type=jnp.float32)          # (H, w)
        o_ref[i] = jnp.dot(tmp, wxt,
                           preferred_element_type=jnp.float32).astype(o_ref.dtype)


def bilinear_resize_images(x, out_h: int, out_w: int):
    """x: (N, h, w) stack of single-channel maps -> (N, out_h, out_w)."""
    N, h, w = x.shape
    wy = _bilinear_weight_matrix(out_h, h)            # (H, h)  f32
    wx = _bilinear_weight_matrix(out_w, w)            # (W, w)  f32
    hw, HW = h * w, out_h * out_w

    vmem_limit = _vmem_limit_bytes()
    _, _, multi_core = _tpu_info()

    itemsize = int(np.dtype(x.dtype).itemsize)
    row_mult = 16 if itemsize == 2 else 8             # bf16 packs 16 rows/sublane group

    # Kron weights follow the input dtype: bf16 inputs use the fast bf16 MXU path.
    compute_dtype = jnp.bfloat16 if x.dtype == jnp.bfloat16 else jnp.float32
    kt_bytes = hw * HW * int(np.dtype(compute_dtype).itemsize)

    # Explicit VMEM budget for the kron path: kt (double buffered) + double
    # buffered (mb, hw) input and (mb, HW) output blocks, with headroom for
    # Mosaic internal scratch.
    budget = int(vmem_limit * 0.75)
    avail = budget - 2 * kt_bytes
    per_row = 2 * itemsize * (hw + HW)
    mb_max = avail // per_row if avail > 0 else 0

    if kt_bytes <= _KRON_BYTES_LIMIT and mb_max >= row_mult:
        # Collapse the separable resize into ONE lane-dense matmul:
        #   out[n, (H,W)] = sum_{(h,w)} x[n,(h,w)] * Wy[H,h] * Wx[W,w]
        mb = min(512, _round_up(N, row_mult), (mb_max // row_mult) * row_mult)
        if multi_core and N > row_mult:
            # Give v7x's two TensorCores at least two grid steps to shard.
            mb = min(mb, _round_up(_cdiv(N, 2), row_mult))
        mb = max(mb, row_mult)
        n_pad = _round_up(N, mb)
        xf = x.reshape(N, hw)
        if n_pad != N:
            xf = jnp.pad(xf, ((0, n_pad - N), (0, 0)))
        kt = jnp.asarray(np.kron(wy, wx).T, dtype=compute_dtype)   # (h*w, H*W)
        # TODO(synk): single-buffer the kt BlockSpec (pipeline_mode=pl.Buffered(1),
        # its block index never changes) to halve its VMEM share once confirmed
        # on the target toolchain.
        out = pl.pallas_call(
            _bilinear_matmul_kernel,
            out_shape=jax.ShapeDtypeStruct((n_pad, HW), x.dtype),
            grid=(n_pad // mb,),
            in_specs=[
                pl.BlockSpec((mb, hw), lambda n: (n, 0)),
                pl.BlockSpec((hw, HW), lambda n: (0, 0)),
            ],
            out_specs=pl.BlockSpec((mb, HW), lambda n: (n, 0)),
            compiler_params=pltpu.CompilerParams(
                dimension_semantics=("parallel",),
                vmem_limit_bytes=vmem_limit,
            ),
        )(xf, kt)
        return out[:N].reshape(N, out_h, out_w)

    # Large spatial maps: separable two-matmul path, G images per grid step,
    # Wx pre-transposed so there is no in-kernel relayout.
    wyj = jnp.asarray(wy)                              # (H, h)  f32
    wxt = jnp.asarray(wx.T)                            # (w, W)  f32
    per_img = 4 * (out_h * w) + itemsize * hw + itemsize * HW
    g_budget = int(vmem_limit * 0.5) // max(2 * per_img, 1)
    G = int(max(1, min(8, g_budget)))
    n_pad = _round_up(N, G)
    if n_pad != N:
        x = jnp.pad(x, ((0, n_pad - N), (0, 0), (0, 0)))
    out = pl.pallas_call(
        functools.partial(_bilinear_separable_kernel, g=G),
        out_shape=jax.ShapeDtypeStruct((n_pad, out_h, out_w), x.dtype),
        grid=(n_pad // G,),
        in_specs=[
            pl.BlockSpec((G, h, w), lambda n: (n, 0, 0)),
            pl.BlockSpec((out_h, h), lambda n: (0, 0)),
            pl.BlockSpec((w, out_w), lambda n: (0, 0)),
        ],
        out_specs=pl.BlockSpec((G, out_h, out_w), lambda n: (n, 0, 0)),
        compiler_params=pltpu.CompilerParams(
            dimension_semantics=("parallel",),
            vmem_limit_bytes=vmem_limit,
        ),
    )(x, wyj, wxt)
    return out[:N]


# ---------------------------------------------------------------------------
# Attention kernels
# ---------------------------------------------------------------------------
def _attention_single_tile_kernel(q_ref, k_ref, v_ref, o_ref, *, scale):
    """Whole sequence in one kv block: plain softmax, no online-softmax state."""
    q = q_ref[0] * scale                  # scale folded into the small (S, d) tile
    k = k_ref[0]
    v = v_ref[0]
    # QK^T without materializing K^T: contract feature axes on the MXU.
    s = jax.lax.dot_general(q, k, dimension_numbers=(((1,), (1,)), ((), ())),
                            preferred_element_type=jnp.float32)     # (S, S) f32
    m = jnp.max(s, axis=-1, keepdims=True)
    p = jnp.exp(s - m)
    l = jnp.sum(p, axis=-1, keepdims=True)
    acc = jnp.dot(p.astype(v.dtype), v, preferred_element_type=jnp.float32)
    inv_l = pl.reciprocal(l, approx=True)                            # EUP, frees VALU
    o_ref[0] = (acc * inv_l).astype(o_ref.dtype)


def _flash_attention_kernel(q_ref, k_ref, v_ref, o_ref, m_sc, l_sc, acc_sc,
                            *, scale, s_valid, tk, need_mask):
    kv = pl.program_id(2)

    @pl.when(kv == 0)
    def _init():
        m_sc[...] = jnp.full(m_sc.shape, -jnp.inf, jnp.float32)
        l_sc[...] = jnp.zeros(l_sc.shape, jnp.float32)
        acc_sc[...] = jnp.zeros(acc_sc.shape, jnp.float32)

    q = q_ref[0] * scale               # (tq, d): fold scale here, not on (tq, tk)
    k = k_ref[0]                       # (tk, d)
    v = v_ref[0]                       # (tk, d)

    s = jax.lax.dot_general(
        q, k, dimension_numbers=(((1,), (1,)), ((), ())),
        preferred_element_type=jnp.float32)                         # (tq, tk) f32

    if need_mask:                                                    # static python bool
        key_idx = kv * tk + jax.lax.broadcasted_iota(jnp.int32, s.shape, 1)
        s = jnp.where(key_idx < s_valid, s, jnp.float32(-1e30))

    m_prev = m_sc[...]
    m_new = jnp.maximum(m_prev, jnp.max(s, axis=-1, keepdims=True))
    alpha = jnp.exp(m_prev - m_new)
    p = jnp.exp(s - m_new)
    l_sc[...] = alpha * l_sc[...] + jnp.sum(p, axis=-1, keepdims=True)
    acc_sc[...] = alpha * acc_sc[...] + jnp.dot(
        p.astype(v.dtype), v, preferred_element_type=jnp.float32)
    m_sc[...] = m_new

    @pl.when(kv == pl.num_programs(2) - 1)
    def _finalize():
        inv_l = pl.reciprocal(l_sc[...], approx=True)
        o_ref[0] = (acc_sc[...] * inv_l).astype(o_ref.dtype)


def attention_module(q, k, v, height=None, width=None):
    """Concrete attention module the adapter wraps.

    Expects q/k/v of shape (*batch, height, width, d); raises (at trace time) a
    PyTorch-style size-mismatch error if the spatial dims do not match.
    """
    for name, t in (("q", q), ("k", k), ("v", v)):
        if tuple(t.shape[-3:-1]) != (height, width):
            raise RuntimeError(
                f"The size of tensor a ({t.shape[-3]}) must match the size of "
                f"tensor b ({height}) at non-singleton dimension 1  [{name}]")

    *lead, hh, ww, d = q.shape
    B = int(np.prod(lead)) if lead else 1
    S = hh * ww
    qf = q.reshape(B, S, d)
    kf = k.reshape(B, S, d)
    vf = v.reshape(B, S, d)

    vmem_limit = _vmem_limit_bytes()
    _, is_v5, _ = _tpu_info()

    # Head dim: do NOT inflate HBM traffic for small d (d=4 would be a 32x pad).
    # Blocks keep the full last dim (allowed by BlockSpec); masked sub-128-lane
    # stores cost far less than the extra HBM passes.  Only pad when d >= 64.
    if d % 128 == 0 or d < 64:
        dp = d
    else:
        dp = _round_up(d, 128)
    if dp != d:
        pad = ((0, 0), (0, 0), (0, dp - d))
        qf = jnp.pad(qf, pad)
        kf = jnp.pad(kf, pad)
        vf = jnp.pad(vf, pad)

    scale = 1.0 / math.sqrt(d)

    # --- Fast path: whole sequence fits one tile (the adapter's common case,
    # e.g. 16x16 -> S=256).  grid=(B,), no kv reduction, no online softmax.
    single_tile_max = 256 if is_v5 else 512
    if S <= single_tile_max:
        spec = pl.BlockSpec((1, S, dp), lambda b: (b, 0, 0))
        out = pl.pallas_call(
            functools.partial(_attention_single_tile_kernel, scale=scale),
            out_shape=jax.ShapeDtypeStruct((B, S, dp), q.dtype),
            grid=(B,),
            in_specs=[spec, spec, spec],
            out_specs=spec,
            compiler_params=pltpu.CompilerParams(
                dimension_semantics=("parallel",),
                vmem_limit_bytes=vmem_limit,
            ),
        )(qf, kf, vf)
        if dp != d:
            out = out[..., :d]
        return out.reshape(*lead, hh, ww, d)

    # --- kv-tiled flash path for longer sequences.
    # kv tile matches the MXU generation (128 on v5e, 256 on v6e/v7x); prefer a
    # tile that divides S so the seq pad + key mask are compiled out entirely.
    tk = 128 if is_v5 else 256
    if S % tk != 0:
        for cand in (256, 128):
            if cand <= tk and S % cand == 0:
                tk = cand
                break
    S_pad = _round_up(S, tk)

    # Decouple query tile from kv tile: larger tq -> fewer K/V HBM re-reads.
    tq = 256 if is_v5 else 512
    while tq > tk and S_pad % tq != 0:
        tq //= 2
    tq = max(tq, tk)

    if S_pad != S:
        pad = ((0, 0), (0, S_pad - S), (0, 0))
        qf = jnp.pad(qf, pad)
        kf = jnp.pad(kf, pad)
        vf = jnp.pad(vf, pad)

    grid = (B, S_pad // tq, S_pad // tk)   # kv axis last (reduction)
    kernel = functools.partial(
        _flash_attention_kernel,
        scale=scale,
        s_valid=S,
        tk=tk,
        need_mask=(S_pad != S),
    )
    out = pl.pallas_call(
        kernel,
        out_shape=jax.ShapeDtypeStruct((B, S_pad, dp), q.dtype),
        grid=grid,
        in_specs=[
            pl.BlockSpec((1, tq, dp), lambda b, qi, ki: (b, qi, 0)),
            pl.BlockSpec((1, tk, dp), lambda b, qi, ki: (b, ki, 0)),
            pl.BlockSpec((1, tk, dp), lambda b, qi, ki: (b, ki, 0)),
        ],
        out_specs=pl.BlockSpec((1, tq, dp), lambda b, qi, ki: (b, qi, 0)),
        scratch_shapes=[
            pltpu.VMEM((tq, 1), jnp.float32),    # running row max
            pltpu.VMEM((tq, 1), jnp.float32),    # running denominator
            pltpu.VMEM((tq, dp), jnp.float32),   # running numerator
        ],
        compiler_params=pltpu.CompilerParams(
            dimension_semantics=("parallel", "parallel", "arbitrary"),
            vmem_limit_bytes=vmem_limit,
        ),
    )(qf, kf, vf)

    if S_pad != S or dp != d:
        out = out[:, :S, :d]
    return out.reshape(*lead, hh, ww, d)


# ---------------------------------------------------------------------------
# The adapter itself (mirrors the PyTorch wrapper's control flow).
# ---------------------------------------------------------------------------
class AttentionAdapter:
    """Wraps an attention module to make input sizes compatible."""

    def __init__(self, attention_module):
        self.attention_module = attention_module

    def __call__(self, *args, **kwargs):
        try:
            return self.attention_module(*args, **kwargs)
        except RuntimeError as e:
            if 'size of tensor' in str(e) and 'must match' in str(e):
                q, k, v = args[:3]
                height, width = None, None
                if len(args) > 3:
                    height = args[3]
                if len(args) > 4:
                    width = args[4]
                if height is None and 'height' in kwargs:
                    height = kwargs['height']
                if width is None and 'width' in kwargs:
                    width = kwargs['width']
                if height is not None and width is not None:
                    target_shape = (height, width)
                    q = self._adapt_tensor(q, target_shape)
                    k = self._adapt_tensor(k, target_shape)
                    v = self._adapt_tensor(v, target_shape)
                    args_list = list(args)
                    args_list[0:3] = [q, k, v]
                    return self.attention_module(*args_list, **kwargs)
            raise e

    def _adapt_tensor(self, tensor, target_shape):
        """Resize spatial dims to target_shape via bilinear interpolation."""
        if tensor.ndim < 3:
            return tensor
        *batch_dims, h, w, d = tensor.shape
        if h == target_shape[0] and w == target_shape[1]:
            return tensor
        # Reproduce PyTorch's raw `.reshape(-1, d, h, w)` (memory reinterpretation,
        # NOT a transpose) followed by identity permutes.
        tensor_4d = tensor.reshape(-1, d, h, w)
        n, c = tensor_4d.shape[0], tensor_4d.shape[1]
        imgs = tensor_4d.reshape(n * c, h, w)
        resized = bilinear_resize_images(imgs, target_shape[0], target_shape[1])
        return resized.reshape(*batch_dims, target_shape[0], target_shape[1], d)


# ---------------------------------------------------------------------------
# Pure-JAX reference (no Pallas) for validation
# ---------------------------------------------------------------------------
def _reference_forward(q, k, v, height, width):
    def adapt(t):
        *bd, h, w, d = t.shape
        if (h, w) == (height, width):
            return t
        imgs = t.reshape(-1, h, w).astype(jnp.float32)   # same raw reshape semantics
        wy = jnp.asarray(_bilinear_weight_matrix(height, h))
        wx = jnp.asarray(_bilinear_weight_matrix(width, w))
        out = jnp.einsum('nhw,Hh,Ww->nHW', imgs, wy, wx)
        return out.reshape(*bd, height, width, d).astype(t.dtype)

    qa, ka, va = adapt(q), adapt(k), adapt(v)
    *bd, hh, ww, d = qa.shape
    B = int(np.prod(bd)) if bd else 1
    S = hh * ww
    qf = qa.reshape(B, S, d).astype(jnp.float32)
    kf = ka.reshape(B, S, d).astype(jnp.float32)
    vf = va.reshape(B, S, d).astype(jnp.float32)
    s = jnp.einsum('bqd,bkd->bqk', qf, kf) / math.sqrt(d)
    p = jax.nn.softmax(s, axis=-1)
    o = jnp.einsum('bqk,bkd->bqd', p, vf)
    return o.reshape(*bd, hh, ww, d)


# ---------------------------------------------------------------------------
# Demo
# ---------------------------------------------------------------------------
if __name__ == "__main__":
    keys = jax.random.split(jax.random.PRNGKey(0), 6)
    adapter = AttentionAdapter(attention_module)

    # --- case 1: small spatial map (adapter's common case) -> single-tile path
    B, d = 2, 4
    h_in, w_in = 8, 8          # q/k/v arrive at the "wrong" spatial size
    height, width = 16, 16     # attention module expects this -> adapt path fires
    q = jax.random.normal(keys[0], (B, h_in, w_in, d), dtype=jnp.float32)
    k = jax.random.normal(keys[1], (B, h_in, w_in, d), dtype=jnp.float32)
    v = jax.random.normal(keys[2], (B, h_in, w_in, d), dtype=jnp.float32)

    out = jax.block_until_ready(adapter(q, k, v, height, width))
    assert out.shape == (B, height, width, d), out.shape
    assert bool(jnp.all(jnp.isfinite(out)))
    ref = jax.block_until_ready(_reference_forward(q, k, v, height, width))
    max_err = float(jnp.max(jnp.abs(out - ref)))
    assert max_err < 2e-2, f"case1 max abs error vs reference: {max_err}"

    # --- case 2: longer sequence -> exercises the kv-tiled flash path
    q2 = jax.random.normal(keys[3], (1, 16, 16, 8), dtype=jnp.float32)
    k2 = jax.random.normal(keys[4], (1, 16, 16, 8), dtype=jnp.float32)
    v2 = jax.random.normal(keys[5], (1, 16, 16, 8), dtype=jnp.float32)
    out2 = jax.block_until_ready(adapter(q2, k2, v2, 32, 32))
    assert out2.shape == (1, 32, 32, 8), out2.shape
    assert bool(jnp.all(jnp.isfinite(out2)))
    ref2 = jax.block_until_ready(_reference_forward(q2, k2, v2, 32, 32))
    max_err2 = float(jnp.max(jnp.abs(out2 - ref2)))
    assert max_err2 < 2e-2, f"case2 max abs error vs reference: {max_err2}"

    print("KERNEL_OK")
</pallas_src>

<mosaic_0001>
module attributes {stable_mosaic.version = 11 : i64} {
  func.func @_bilinear_matmul_kernel(%arg0: i32, %arg1: memref<8x64xf32, #tpu.memory_space<vmem>>, %arg2: memref<64x256xf32, #tpu.memory_space<vmem>>, %arg3: memref<8x256xf32, #tpu.memory_space<vmem>>) attributes {dimension_semantics = [#tpu.dimension_semantics<parallel>], iteration_bounds = array<i64: 1>, scalar_prefetch = 0 : i64, scratch_operands = 0 : i64, tpu.core_type = #tpu.core_type<tc>, window_params = [{transform_indices = @transform_0, window_bounds = array<i64: 8, 64>}, {pipeline_mode = #tpu.pipeline_mode<synchronous>, transform_indices = @transform_1, window_bounds = array<i64: 64, 256>}, {transform_indices = @transform_2, window_bounds = array<i64: 8, 256>}]} {
    %c0 = arith.constant 0 : index
    %c0_0 = arith.constant 0 : index
    %0 = vector.load %arg1[%c0, %c0_0] : memref<8x64xf32, #tpu.memory_space<vmem>>, vector<8x64xf32>
    %c0_1 = arith.constant 0 : index
    %c0_2 = arith.constant 0 : index
    %1 = vector.load %arg2[%c0_1, %c0_2] : memref<64x256xf32, #tpu.memory_space<vmem>>, vector<64x256xf32>
    %cst = arith.constant dense<0.000000e+00> : vector<8x256xf32>
    %2 = tpu.matmul %0, %1, %cst {dimension_numbers = #tpu.dot_dimension_numbers<[1], [0], [0], [1], [0, 0, 1, 1], [], []>} : vector<8x64xf32>, vector<64x256xf32>, vector<8x256xf32> -> vector<8x256xf32>
    %c0_3 = arith.constant 0 : index
    %c0_4 = arith.constant 0 : index
    %3 = vector.load %arg3[%c0_3, %c0_4] : memref<8x256xf32, #tpu.memory_space<vmem>>, vector<8x256xf32>
    tpu.vector_store %arg3[%c0_3, %c0_4], %2 {strides = array<i32>} : memref<8x256xf32, #tpu.memory_space<vmem>>, vector<8x256xf32>,
    return
  }
  func.func @transform_0(%arg0: i32) -> (i32, i32) {
    %c0_i32 = arith.constant 0 : i32
    %c0_i32_0 = arith.constant 0 : i32
    return %arg0, %c0_i32 : i32, i32
  }
  func.func @transform_1(%arg0: i32) -> (i32, i32) {
    %c0_i32 = arith.constant 0 : i32
    %c0_i32_0 = arith.constant 0 : i32
    %c0_i32_1 = arith.constant 0 : i32
    return %c0_i32, %c0_i32_0 : i32, i32
  }
  func.func @transform_2(%arg0: i32) -> (i32, i32) {
    %c0_i32 = arith.constant 0 : i32
    %c0_i32_0 = arith.constant 0 : i32
    return %arg0, %c0_i32 : i32, i32
  }
}

</mosaic_0001>

<llo_original>
// kernel: tpu_custom_call.1
$region0: #{tpu_custom_call.1}
  #allocation0 [shape = 'u32[]', space=smem, size = 0x4, offset = 0x4, fixed_abs, tag = 'smem constant byte address 0x4 - core index']
  #allocation1 [shape = 'u32[72,128]{1,0:T(1,128)}', space=vmem, size = 0x9000, scoped, tag = 'internal scratch']
  %s0 = inlined_call_operand.hbm [shape: f32[8,64], index: 0, kind: input, shape index: {}]
  %s1 = inlined_call_operand.hbm [shape: f32[64,256], index: 1, kind: input, shape index: {}]
  %s2 = inlined_call_operand.hbm [shape: f32[8,256], index: 2, kind: output, shape index: {}]
  %s3 = sld [smem:[#allocation0]]
  $region26: #{tpu_custom_call.1} parent=0
    _
  %s5 = ssub.s32 1, %s3
  %s6 = scalar_select 0, %s5, %s3
  $region1: #{tpu_custom_call.1} parent=0
    #allocation2 [shape = 'u8[4096]{0}', space=vmem, size = 0x1000, scoped, tag = 'input window, operand 0, single buffered']
    #allocation3 [shape = 's32[1]{0}', space=sflag, size = 0x4, scoped, tag = 'scoped memory for tpu_custom_call.1']
    #allocation4 [shape = 's32[1]{0}', space=sflag, size = 0x4, scoped, tag = 'scoped memory for tpu_custom_call.1']
    #allocation5 [shape = 'u8[65536]{0}', space=vmem, size = 0x10000, scoped, tag = 'input window, operand 1, single buffered']
    #allocation6 [shape = 's32[1]{0}', space=sflag, size = 0x4, scoped, tag = 'scoped memory for tpu_custom_call.1']
    #allocation7 [shape = 'u8[8192]{0}', space=vmem, size = 0x2000, scoped, tag = 'output window, operand 0, single buffered']
    %7 = vsyncpa [#allocation3], 0
    %8 = vsyncpa [#allocation6], 0
    %9 = vsyncpa [#allocation4], 0
    // Predicated region
    $region2: #{tpu_custom_call.1} parent=1 // pred_check
      _
    $region3: #{tpu_custom_call.1} parent=1 // pred_check_branch
      %11 = sbr.rel (0) target = $region5
    $region4: #{tpu_custom_call.1} parent=1 // pred_region
      %13 = vsyncadd [#allocation3], 0
      %s15 = sshll.u32 %s0, 4
      %s16 = int_to_ptr.hbm [resolvable:$true] %s15
      %s17 = sshll.u32 [#allocation2], 4
      %s18 = int_to_ptr.vmem [resolvable:$true] %s17
      %20 = dma.hbm_to_vmem [thread:$0]  %s16, 128, %s18, [#allocation3]
    $region5: #{tpu_custom_call.1} parent=1 // pred_fallthru
      _
    // Predicated region
    $region6: #{tpu_custom_call.1} parent=1 // pred_check
      _
    $region7: #{tpu_custom_call.1} parent=1 // pred_check_branch
      %22 = sbr.rel (0) target = $region9
    $region8: #{tpu_custom_call.1} parent=1 // pred_region
      %24 = vsyncadd [#allocation6], 0
      %s25 = sshll.u32 %s1, 4
      %s26 = int_to_ptr.hbm [resolvable:$true] %s25
      %s27 = sshll.u32 [#allocation5], 4
      %s28 = int_to_ptr.vmem [resolvable:$true] %s27
      %33 = dma.hbm_to_vmem [thread:$0]  %s26, 2048, %s28, [#allocation6], 256, 256, 16
    $region9: #{tpu_custom_call.1} parent=1 // pred_fallthru
      _
    // Predicated region
    $region10: #{tpu_custom_call.1} parent=1 // pred_check
      _
    $region11: #{tpu_custom_call.1} parent=1 // pred_check_branch
      %35 = sbr.rel (0) target = $region13
    $region12: #{tpu_custom_call.1} parent=1 // pred_region
      %37 = dma.done [#allocation3], 128
    $region13: #{tpu_custom_call.1} parent=1 // pred_fallthru
      _
    // Predicated region
    $region14: #{tpu_custom_call.1} parent=1 // pred_check
      _
    $region15: #{tpu_custom_call.1} parent=1 // pred_check_branch
      %39 = sbr.rel (0) target = $region17
    $region16: #{tpu_custom_call.1} parent=1 // pred_region
      %41 = dma.done [#allocation6], 2048
    $region17: #{tpu_custom_call.1} parent=1 // pred_fallthru
      _
    %v42 = vld [vmem:[#allocation2] sm:$0xff]
    %v43 = vld [vmem:[#allocation5] sm:$0xff]
    %v44 = vld [vmem:[#allocation5 + $0x8] sm:$0xff]
    %v45 = vld [vmem:[#allocation5 + $0x10] sm:$0xff]
    %v46 = vld [vmem:[#allocation5 + $0x18] sm:$0xff]
    %v47 = vld [vmem:[#allocation5 + $0x20] sm:$0xff]
    %v48 = vld [vmem:[#allocation5 + $0x28] sm:$0xff]
    %v49 = vld [vmem:[#allocation5 + $0x30] sm:$0xff]
    %v50 = vld [vmem:[#allocation5 + $0x38] sm:$0xff]
    %v51 = vld [vmem:[#allocation5 + $0x40] sm:$0xff]
    %v52 = vld [vmem:[#allocation5 + $0x48] sm:$0xff]
    %v53 = vld [vmem:[#allocation5 + $0x50] sm:$0xff]
    %v54 = vld [vmem:[#allocation5 + $0x58] sm:$0xff]
    %v55 = vld [vmem:[#allocation5 + $0x60] sm:$0xff]
    %v56 = vld [vmem:[#allocation5 + $0x68] sm:$0xff]
    %v57 = vld [vmem:[#allocation5 + $0x70] sm:$0xff]
    %v58 = vld [vmem:[#allocation5 + $0x78] sm:$0xff]
    %vm59 = vcmask 523264
    %v61 = vsel %vm59, %v42, 0
    %63 = vmatpush.msra.mxu0 0.0
    %64 = vmatpush.msra.mxu0 0.0
    %65 = vmatpush.msra.mxu0 0.0
    %66 = vmatpush.msra.mxu0 0.0
    %67 = vmatpush.msra.mxu0 0.0
    %68 = vmatpush.msra.mxu0 0.0
    %69 = vmatpush.msra.mxu0 0.0
    %70 = vmatpush.msra.mxu0 0.0
    %71 = vmatpush.msra.mxu0 %v57
    %72 = vmatpush.msra.mxu0 %v55
    %73 = vmatpush.msra.mxu0 %v53
    %74 = vmatpush.msra.mxu0 %v51
    %75 = vmatpush.msra.mxu0 %v49
    %76 = vmatpush.msra.mxu0 %v47
    %77 = vmatpush.msra.mxu0 %v45
    %78 = vmatpush.msra.mxu0 %v43
    %79 = vmatmul.f32.gmra.mxu0 %v61
    %v80 = vpop.f32.mrf.mxu0
    %v81 = vadd.f32 0.0, %v80
    %82 = vdwg.mxu0
    %83 = vmatpush.msra.mxu0 0.0
    %84 = vmatpush.msra.mxu0 0.0
    %85 = vmatpush.msra.mxu0 0.0
    %86 = vmatpush.msra.mxu0 0.0
    %87 = vmatpush.msra.mxu0 0.0
    %88 = vmatpush.msra.mxu0 0.0
    %89 = vmatpush.msra.mxu0 0.0
    %90 = vmatpush.msra.mxu0 0.0
    %91 = vmatpush.msra.mxu0 %v58
    %92 = vmatpush.msra.mxu0 %v56
    %93 = vmatpush.msra.mxu0 %v54
    %94 = vmatpush.msra.mxu0 %v52
    %95 = vmatpush.msra.mxu0 %v50
    %96 = vmatpush.msra.mxu0 %v48
    %97 = vmatpush.msra.mxu0 %v46
    %98 = vmatpush.msra.mxu0 %v44
    %99 = vmatmul.f32.gmra.mxu0 %v61
    %v100 = vpop.f32.mrf.mxu0
    %v101 = vadd.f32 0.0, %v100
    %102 = vdwg.mxu0
    %103 = vst [vmem:[#allocation7] sm:$0xff] %v81
    %104 = vst [vmem:[#allocation7 + $0x8] sm:$0xff] %v101
    // Predicated region
    $region18: #{tpu_custom_call.1} parent=1 // pred_check
      _
    $region19: #{tpu_custom_call.1} parent=1 // pred_check_branch
      %106 = sbr.rel (0) target = $region21
    $region20: #{tpu_custom_call.1} parent=1 // pred_region
      %108 = vsyncadd [#allocation4], 0
      %s110 = sshll.u32 [#allocation7], 4
      %s111 = int_to_ptr.vmem [resolvable:$true] %s110
      %s112 = sshll.u32 %s2, 4
      %s113 = int_to_ptr.hbm [resolvable:$true] %s112
      %115 = dma.vmem_to_hbm [thread:$0]  %s111, 256, %s113, [#allocation4]
    $region21: #{tpu_custom_call.1} parent=1 // pred_fallthru
      _
    // Predicated region
    $region22: #{tpu_custom_call.1} parent=1 // pred_check
      _
    $region23: #{tpu_custom_call.1} parent=1 // pred_check_branch
      %117 = sbr.rel (0) target = $region25
    $region24: #{tpu_custom_call.1} parent=1 // pred_region
      %119 = dma.done [#allocation4], 256
    $region25: #{tpu_custom_call.1} parent=1 // pred_fallthru
      _
    %120 = vsyncpa [#allocation3], 1
    %121 = vsyncpa [#allocation6], 1
    %122 = vsyncpa [#allocation4], 1

</llo_original>
